<compile_context>
chip_gen: v5e
topology: v5e:2x2
jax: 0.10.0
libtpu: 0.0.40
codegen_flags: <defaults>
</compile_context>

<pallas_src>
import jax
import jax.numpy as jnp
from jax.experimental import pallas as pl
from jax.experimental.pallas import tpu as pltpu


def _round_up(a, m):
    return (a + m - 1) // m * m


def _choose_batch_tiling(batch, in_features):
    """Pick batch tile TB (multiple of 8) and the padded batch extent.

    Prefers a TB that divides the (8-aligned) batch so the wrapper never has to
    materialize a padded copy of x, keeps the double-buffered x tile under
    ~8 MiB of VMEM, and tries to leave >= 2 batch tiles so both v7x TensorCores
    get work on the 'parallel' axis.
    """
    row_budget = max(8, ((1 << 20) // max(in_features, 1)) // 8 * 8)
    cap = max(8, min(256, row_budget))
    batch_pad = _round_up(batch, 8)
    tb = min(cap, batch_pad)
    while tb > 8 and batch_pad % tb != 0:
        tb -= 8
    # v7x megacore: prefer >= 2 tiles on the parallel (batch) axis.
    if batch_pad // tb < 2:
        for cand in range(tb - 8, 7, -8):
            if batch_pad % cand == 0 and batch_pad // cand >= 2:
                tb = cand
                break
    return tb, batch_pad


def _catmull_rom_basis(out_features, kp1, kp1_pad):
    """Build B (out_features, kp1_pad) such that weight = B @ control_points."""
    k = kp1 - 1
    t_values = jnp.linspace(0.0, 1.0, out_features, dtype=jnp.float32)
    t_scaled = t_values * k
    j = jnp.floor(t_scaled).astype(jnp.int32)
    # NOTE: t_local is computed BEFORE clamping j (matches the torch reference,
    # including the t=1 endpoint behavior). Do not reorder.
    t = t_scaled - j.astype(jnp.float32)
    j = jnp.clip(j, 1, k - 2)
    t2 = t * t
    t3 = t2 * t
    c0 = 0.5 * (-t + 2.0 * t2 - t3)
    c1 = 0.5 * (2.0 - 5.0 * t2 + 3.0 * t3)
    c2 = 0.5 * (t + 4.0 * t2 - 3.0 * t3)
    c3 = 0.5 * (-t2 + t3)
    cols = jnp.arange(kp1_pad, dtype=jnp.int32)[None, :]
    B = (c0[:, None] * (cols == (j - 1)[:, None])
         + c1[:, None] * (cols == j[:, None])
         + c2[:, None] * (cols == (j + 1)[:, None])
         + c3[:, None] * (cols == (j + 2)[:, None]))
    return B.astype(jnp.float32)


def _make_kernel(cache_z, bt_resident):
    def kernel(x_ref, cpT_ref, bT_ref, bias_ref, o_ref, z_ref):
        # x_ref   : (TB, in)                activation tile
        # cpT_ref : (in, kp1_pad)           control points^T (VMEM resident)
        # bT_ref  : (nj|1, kp1_pad, TO)     Catmull-Rom basis B^T per out tile
        # bias_ref: (nj|1, 1, TO)           bias per out tile
        # o_ref   : (TB, TO)                lane-dense output tile
        # z_ref   : (TB, kp1_pad) scratch   cached x @ C^T for this batch tile
        j = pl.program_id(1)

        if cache_z:
            # First matmul runs once per batch tile; all out tiles reuse it.
            @pl.when(j == 0)
            def _():
                z_ref[...] = jnp.dot(x_ref[...], cpT_ref[...],
                                     preferred_element_type=jnp.float32)
            z = z_ref[...]
        else:
            z = jnp.dot(x_ref[...], cpT_ref[...],
                        preferred_element_type=jnp.float32)

        jt = j if bt_resident else 0
        y = jnp.dot(z, bT_ref[jt], preferred_element_type=jnp.float32)
        o_ref[...] = (y + bias_ref[jt]).astype(o_ref.dtype)

    return kernel


def spline_compressed_linear(x, control_points, bias, out_features):
    """Forward pass of SplineCompressedLinear.

    x:              (batch, in_features) f32
    control_points: (k+1, in_features)   f32
    bias:           (out_features,) f32, or None
    """
    x = jnp.asarray(x, jnp.float32)
    control_points = jnp.asarray(control_points, jnp.float32)

    batch, in_features = x.shape
    kp1 = control_points.shape[0]
    k = kp1 - 1
    assert k >= 3, "Catmull-Rom needs at least 4 control points (k >= 3)"
    assert control_points.shape[1] == in_features

    # ---- TPU-friendly extents -------------------------------------------------
    kp1_pad = _round_up(kp1, 128)                 # lane-dense spline axis
    out_pad = _round_up(out_features, 128)
    tb, batch_pad = _choose_batch_tiling(batch, in_features)
    to = 512 if out_pad % 512 == 0 else (256 if out_pad % 256 == 0 else 128)
    nb, nj = batch_pad // tb, out_pad // to

    # ---- x: only copy/pad when the batch is ragged w.r.t. the tile ------------
    if batch_pad != batch:
        x_p = jnp.zeros((batch_pad, in_features), jnp.float32).at[:batch, :].set(x)
    else:
        x_p = x

    # ---- tiny one-time tables (zero padding never affects valid outputs) ------
    cpT = jnp.zeros((in_features, kp1_pad), jnp.float32)
    cpT = cpT.at[:, :kp1].set(control_points.T)

    B = _catmull_rom_basis(out_features, kp1, kp1_pad)            # (out, kp1_pad)
    bT = jnp.zeros((kp1_pad, out_pad), jnp.float32).at[:, :out_features].set(B.T)
    bT3 = bT.reshape(kp1_pad, nj, to).transpose(1, 0, 2)          # (nj, kp1_pad, to)

    bias_p = jnp.zeros((out_pad,), jnp.float32)
    if bias is not None:
        bias_p = bias_p.at[:out_features].set(jnp.asarray(bias, jnp.float32))
    bias3 = bias_p.reshape(nj, 1, to)                             # (nj, 1, to)

    # Keep B^T fully VMEM-resident unless unusually large (out_pad > ~8K).
    bt_resident = kp1_pad * out_pad * 4 <= (4 << 20)
    # Cache z once per batch tile unless the batch axis cannot be split
    # (decode-style); then keep both grid axes 'parallel' for the v7x megacore.
    cache_z = (nb > 1) or (nj == 1)

    kernel = _make_kernel(cache_z, bt_resident)
    grid = (nb, nj)

    flops = (2 * batch_pad * in_features * kp1_pad
             + 2 * batch_pad * kp1_pad * out_pad)
    bytes_accessed = 4 * (batch_pad * in_features + in_features * kp1_pad
                          + kp1_pad * out_pad + out_pad + batch_pad * out_pad)
    cost = pl.CostEstimate(flops=flops, transcendentals=0,
                           bytes_accessed=bytes_accessed)

    def build(single_buffer):
        # Resident operands have a constant block index -> double-buffering them
        # only burns VMEM; request a single buffer when supported.
        res = {"pipeline_mode": pl.Buffered(1)} if single_buffer else {}
        if bt_resident:
            bt_spec = pl.BlockSpec((nj, kp1_pad, to), lambda i, j: (0, 0, 0), **res)
            bias_spec = pl.BlockSpec((nj, 1, to), lambda i, j: (0, 0, 0), **res)
        else:
            bt_spec = pl.BlockSpec((1, kp1_pad, to), lambda i, j: (j, 0, 0))
            bias_spec = pl.BlockSpec((1, 1, to), lambda i, j: (j, 0, 0))
        in_specs = [
            pl.BlockSpec((tb, in_features), lambda i, j: (i, 0)),             # x tile
            pl.BlockSpec((in_features, kp1_pad), lambda i, j: (0, 0), **res),  # C^T
            bt_spec,                                                            # B^T
            bias_spec,                                                          # bias
        ]
        return pl.pallas_call(
            kernel,
            out_shape=jax.ShapeDtypeStruct((batch_pad, out_pad), jnp.float32),
            grid_spec=pltpu.PrefetchScalarGridSpec(
                num_scalar_prefetch=0,
                grid=grid,
                in_specs=in_specs,
                out_specs=pl.BlockSpec((tb, to), lambda i, j: (i, j)),
                scratch_shapes=[pltpu.VMEM((tb, kp1_pad), jnp.float32)],
            ),
            compiler_params=pltpu.CompilerParams(
                dimension_semantics=("parallel",
                                     "arbitrary" if cache_z else "parallel"),
                vmem_limit_bytes=32 * 1024 * 1024,
            ),
            cost_estimate=cost,
        )

    args = (x_p, cpT, bT3, bias3)
    try:
        out = build(single_buffer=True)(*args)
    except Exception:
        # Fallback: this jax/Mosaic version rejects pl.Buffered(1) on a
        # resident BlockSpec -- identical semantics, just extra VMEM.
        out = build(single_buffer=False)(*args)

    if batch_pad != batch or out_pad != out_features:
        out = out[:batch, :out_features]
    return out


def _reference(x, control_points, bias, out_features):
    """Pure-JAX reference mirroring the PyTorch forward exactly."""
    k = control_points.shape[0] - 1
    t_values = jnp.linspace(0.0, 1.0, out_features, dtype=jnp.float32)
    t_scaled = t_values * k
    j = jnp.floor(t_scaled).astype(jnp.int32)
    t_local = (t_scaled - j.astype(jnp.float32))[:, None]
    j = jnp.clip(j, 1, k - 2)
    p0, p1, p2, p3 = (control_points[j - 1], control_points[j],
                      control_points[j + 1], control_points[j + 2])
    w = 0.5 * (2 * p1 + (-p0 + p2) * t_local
               + (2 * p0 - 5 * p1 + 4 * p2 - p3) * t_local**2
               + (-p0 + 3 * p1 - 3 * p2 + p3) * t_local**3)
    y = x @ w.T
    if bias is not None:
        y = y + bias[None, :]
    return y


if __name__ == "__main__":
    key = jax.random.PRNGKey(0)
    in_features = 32
    out_features = 64
    k = 15
    batch = 8

    k_cp, k_x = jax.random.split(key)
    # Matches __init__: control_points = randn(k+1, in) * 0.02, bias = zeros(out)
    control_points = jax.random.normal(k_cp, (k + 1, in_features), dtype=jnp.float32) * 0.02
    bias = jnp.zeros((out_features,), dtype=jnp.float32)
    x = jax.random.normal(k_x, (batch, in_features), dtype=jnp.float32)

    y = spline_compressed_linear(x, control_points, bias, out_features)
    y = jax.block_until_ready(y)

    y_ref = _reference(x, control_points, bias, out_features)
    assert y.shape == (batch, out_features)
    assert jnp.allclose(y, y_ref, atol=1e-5, rtol=1e-5), "mismatch vs reference"

    print("KERNEL_OK")
</pallas_src>

<mosaic_0001>
module attributes {stable_mosaic.version = 11 : i64} {
  func.func @kernel(%arg0: i32, %arg1: i32, %arg2: memref<8x32xf32, #tpu.memory_space<vmem>>, %arg3: memref<32x128xf32, #tpu.memory_space<vmem>>, %arg4: memref<1x128x128xf32, #tpu.memory_space<vmem>>, %arg5: memref<1x1x128xf32, #tpu.memory_space<vmem>>, %arg6: memref<8x128xf32, #tpu.memory_space<vmem>>, %arg7: memref<8x128xf32, #tpu.memory_space<vmem>>) attributes {dimension_semantics = [#tpu.dimension_semantics<parallel>, #tpu.dimension_semantics<arbitrary>], iteration_bounds = array<i64: 1, 1>, scalar_prefetch = 0 : i64, scratch_operands = 1 : i64, tpu.core_type = #tpu.core_type<tc>, window_params = [{transform_indices = @transform_0, window_bounds = array<i64: 8, 32>}, {pipeline_mode = #tpu.pipeline_mode<synchronous>, transform_indices = @transform_1, window_bounds = array<i64: 32, 128>}, {pipeline_mode = #tpu.pipeline_mode<synchronous>, transform_indices = @transform_2, window_bounds = array<i64: 1, 128, 128>}, {pipeline_mode = #tpu.pipeline_mode<synchronous>, transform_indices = @transform_3, window_bounds = array<i64: 1, 1, 128>}, {transform_indices = @transform_4, window_bounds = array<i64: 8, 128>}]} {
    %c0_i32 = arith.constant 0 : i32
    %0 = arith.cmpi eq, %arg1, %c0_i32 : i32
    %1 = arith.extui %0 : i1 to i32
    %c0_i32_0 = arith.constant 0 : i32
    %2 = arith.cmpi ne, %1, %c0_i32_0 : i32
    scf.if %2 {
      %c0_8 = arith.constant 0 : index
      %c0_9 = arith.constant 0 : index
      %14 = vector.load %arg2[%c0_8, %c0_9] : memref<8x32xf32, #tpu.memory_space<vmem>>, vector<8x32xf32>
      %c0_10 = arith.constant 0 : index
      %c0_11 = arith.constant 0 : index
      %15 = vector.load %arg3[%c0_10, %c0_11] : memref<32x128xf32, #tpu.memory_space<vmem>>, vector<32x128xf32>
      %cst_12 = arith.constant dense<0.000000e+00> : vector<8x128xf32>
      %16 = tpu.matmul %14, %15, %cst_12 {dimension_numbers = #tpu.dot_dimension_numbers<[1], [0], [0], [1], [0, 0, 1, 1], [], []>} : vector<8x32xf32>, vector<32x128xf32>, vector<8x128xf32> -> vector<8x128xf32>
      %c0_13 = arith.constant 0 : index
      %c0_14 = arith.constant 0 : index
      %17 = vector.load %arg7[%c0_13, %c0_14] : memref<8x128xf32, #tpu.memory_space<vmem>>, vector<8x128xf32>
      tpu.vector_store %arg7[%c0_13, %c0_14], %16 {strides = array<i32>} : memref<8x128xf32, #tpu.memory_space<vmem>>, vector<8x128xf32>,
    } else {
    }
    %c0 = arith.constant 0 : index
    %c0_1 = arith.constant 0 : index
    %3 = vector.load %arg7[%c0, %c0_1] : memref<8x128xf32, #tpu.memory_space<vmem>>, vector<8x128xf32>
    %4 = arith.index_cast %arg1 : i32 to index
    %c0_2 = arith.constant 0 : index
    %c0_3 = arith.constant 0 : index
    %5 = vector.load %arg4[%4, %c0_2, %c0_3] : memref<1x128x128xf32, #tpu.memory_space<vmem>>, vector<1x128x128xf32>
    %6 = vector.shape_cast %5 : vector<1x128x128xf32> to vector<128x128xf32>
    %cst = arith.constant dense<0.000000e+00> : vector<8x128xf32>
    %7 = tpu.matmul %3, %6, %cst {dimension_numbers = #tpu.dot_dimension_numbers<[1], [0], [0], [1], [0, 0, 1, 1], [], []>} : vector<8x128xf32>, vector<128x128xf32>, vector<8x128xf32> -> vector<8x128xf32>
    %8 = arith.index_cast %arg1 : i32 to index
    %c0_4 = arith.constant 0 : index
    %c0_5 = arith.constant 0 : index
    %9 = vector.load %arg5[%8, %c0_4, %c0_5] : memref<1x1x128xf32, #tpu.memory_space<vmem>>, vector<1x1x128xf32>
    %10 = vector.shape_cast %9 : vector<1x1x128xf32> to vector<1x128xf32>
    %11 = vector.broadcast %10 : vector<1x128xf32> to vector<8x128xf32>
    %12 = arith.addf %7, %11 : vector<8x128xf32>
    %c0_6 = arith.constant 0 : index
    %c0_7 = arith.constant 0 : index
    %13 = vector.load %arg6[%c0_6, %c0_7] : memref<8x128xf32, #tpu.memory_space<vmem>>, vector<8x128xf32>
    tpu.vector_store %arg6[%c0_6, %c0_7], %12 {strides = array<i32>} : memref<8x128xf32, #tpu.memory_space<vmem>>, vector<8x128xf32>,
    return
  }
  func.func @transform_0(%arg0: i32, %arg1: i32) -> (i32, i32) {
    %c0_i32 = arith.constant 0 : i32
    %c0_i32_0 = arith.constant 0 : i32
    return %arg0, %c0_i32 : i32, i32
  }
  func.func @transform_1(%arg0: i32, %arg1: i32) -> (i32, i32) {
    %c0_i32 = arith.constant 0 : i32
    %c0_i32_0 = arith.constant 0 : i32
    %c0_i32_1 = arith.constant 0 : i32
    return %c0_i32, %c0_i32_0 : i32, i32
  }
  func.func @transform_2(%arg0: i32, %arg1: i32) -> (i32, i32, i32) {
    %c0_i32 = arith.constant 0 : i32
    %c0_i32_0 = arith.constant 0 : i32
    %c0_i32_1 = arith.constant 0 : i32
    %c0_i32_2 = arith.constant 0 : i32
    return %c0_i32, %c0_i32_0, %c0_i32_1 : i32, i32, i32
  }
  func.func @transform_3(%arg0: i32, %arg1: i32) -> (i32, i32, i32) {
    %c0_i32 = arith.constant 0 : i32
    %c0_i32_0 = arith.constant 0 : i32
    %c0_i32_1 = arith.constant 0 : i32
    %c0_i32_2 = arith.constant 0 : i32
    return %c0_i32, %c0_i32_0, %c0_i32_1 : i32, i32, i32
  }
  func.func @transform_4(%arg0: i32, %arg1: i32) -> (i32, i32) {
    %c0_i32 = arith.constant 0 : i32
    return %arg0, %arg1 : i32, i32
  }
}

module attributes {stable_mosaic.version = 11 : i64} {
  func.func @kernel(%arg0: i32, %arg1: i32, %arg2: memref<8x32xf32, #tpu.memory_space<vmem>>, %arg3: memref<32x128xf32, #tpu.memory_space<vmem>>, %arg4: memref<1x128x128xf32, #tpu.memory_space<vmem>>, %arg5: memref<1x1x128xf32, #tpu.memory_space<vmem>>, %arg6: memref<8x128xf32, #tpu.memory_space<vmem>>, %arg7: memref<8x128xf32, #tpu.memory_space<vmem>>) attributes {dimension_semantics = [#tpu.dimension_semantics<parallel>, #tpu.dimension_semantics<arbitrary>], iteration_bounds = array<i64: 1, 1>, scalar_prefetch = 0 : i64, scratch_operands = 1 : i64, tpu.core_type = #tpu.core_type<tc>, window_params = [{transform_indices = @transform_0, window_bounds = array<i64: 8, 32>}, {pipeline_mode = #tpu.pipeline_mode<synchronous>, transform_indices = @transform_1, window_bounds = array<i64: 32, 128>}, {pipeline_mode = #tpu.pipeline_mode<synchronous>, transform_indices = @transform_2, window_bounds = array<i64: 1, 128, 128>}, {pipeline_mode = #tpu.pipeline_mode<synchronous>, transform_indices = @transform_3, window_bounds = array<i64: 1, 1, 128>}, {transform_indices = @transform_4, window_bounds = array<i64: 8, 128>}]} {
    %c0_i32 = arith.constant 0 : i32
    %0 = arith.cmpi eq, %arg1, %c0_i32 : i32
    %1 = arith.extui %0 : i1 to i32
    %c0_i32_0 = arith.constant 0 : i32
    %2 = arith.cmpi ne, %1, %c0_i32_0 : i32
    scf.if %2 {
      %c0_8 = arith.constant 0 : index
      %c0_9 = arith.constant 0 : index
      %14 = vector.load %arg2[%c0_8, %c0_9] : memref<8x32xf32, #tpu.memory_space<vmem>>, vector<8x32xf32>
      %c0_10 = arith.constant 0 : index
      %c0_11 = arith.constant 0 : index
      %15 = vector.load %arg3[%c0_10, %c0_11] : memref<32x128xf32, #tpu.memory_space<vmem>>, vector<32x128xf32>
      %cst_12 = arith.constant dense<0.000000e+00> : vector<8x128xf32>
      %16 = tpu.matmul %14, %15, %cst_12 {dimension_numbers = #tpu.dot_dimension_numbers<[1], [0], [0], [1], [0, 0, 1, 1], [], []>} : vector<8x32xf32>, vector<32x128xf32>, vector<8x128xf32> -> vector<8x128xf32>
      %c0_13 = arith.constant 0 : index
      %c0_14 = arith.constant 0 : index
      %17 = vector.load %arg7[%c0_13, %c0_14] : memref<8x128xf32, #tpu.memory_space<vmem>>, vector<8x128xf32>
      tpu.vector_store %arg7[%c0_13, %c0_14], %16 {strides = array<i32>} : memref<8x128xf32, #tpu.memory_space<vmem>>, vector<8x128xf32>,
    } else {
    }
    %c0 = arith.constant 0 : index
    %c0_1 = arith.constant 0 : index
    %3 = vector.load %arg7[%c0, %c0_1] : memref<8x128xf32, #tpu.memory_space<vmem>>, vector<8x128xf32>
    %4 = arith.index_cast %arg1 : i32 to index
    %c0_2 = arith.constant 0 : index
    %c0_3 = arith.constant 0 : index
    %5 = vector.load %arg4[%4, %c0_2, %c0_3] : memref<1x128x128xf32, #tpu.memory_space<vmem>>, vector<1x128x128xf32>
    %6 = vector.shape_cast %5 : vector<1x128x128xf32> to vector<128x128xf32>
    %cst = arith.constant dense<0.000000e+00> : vector<8x128xf32>
    %7 = tpu.matmul %3, %6, %cst {dimension_numbers = #tpu.dot_dimension_numbers<[1], [0], [0], [1], [0, 0, 1, 1], [], []>} : vector<8x128xf32>, vector<128x128xf32>, vector<8x128xf32> -> vector<8x128xf32>
    %8 = arith.index_cast %arg1 : i32 to index
    %c0_4 = arith.constant 0 : index
    %c0_5 = arith.constant 0 : index
    %9 = vector.load %arg5[%8, %c0_4, %c0_5] : memref<1x1x128xf32, #tpu.memory_space<vmem>>, vector<1x1x128xf32>
    %10 = vector.shape_cast %9 : vector<1x1x128xf32> to vector<1x128xf32>
    %11 = vector.broadcast %10 : vector<1x128xf32> to vector<8x128xf32>
    %12 = arith.addf %7, %11 : vector<8x128xf32>
    %c0_6 = arith.constant 0 : index
    %c0_7 = arith.constant 0 : index
    %13 = vector.load %arg6[%c0_6, %c0_7] : memref<8x128xf32, #tpu.memory_space<vmem>>, vector<8x128xf32>
    tpu.vector_store %arg6[%c0_6, %c0_7], %12 {strides = array<i32>} : memref<8x128xf32, #tpu.memory_space<vmem>>, vector<8x128xf32>,
    return
  }
  func.func @transform_0(%arg0: i32, %arg1: i32) -> (i32, i32) {
    %c0_i32 = arith.constant 0 : i32
    %c0_i32_0 = arith.constant 0 : i32
    return %arg0, %c0_i32 : i32, i32
  }
  func.func @transform_1(%arg0: i32, %arg1: i32) -> (i32, i32) {
    %c0_i32 = arith.constant 0 : i32
    %c0_i32_0 = arith.constant 0 : i32
    %c0_i32_1 = arith.constant 0 : i32
    return %c0_i32, %c0_i32_0 : i32, i32
  }
  func.func @transform_2(%arg0: i32, %arg1: i32) -> (i32, i32, i32) {
    %c0_i32 = arith.constant 0 : i32
    %c0_i32_0 = arith.constant 0 : i32
    %c0_i32_1 = arith.constant 0 : i32
    %c0_i32_2 = arith.constant 0 : i32
    return %c0_i32, %c0_i32_0, %c0_i32_1 : i32, i32, i32
  }
  func.func @transform_3(%arg0: i32, %arg1: i32) -> (i32, i32, i32) {
    %c0_i32 = arith.constant 0 : i32
    %c0_i32_0 = arith.constant 0 : i32
    %c0_i32_1 = arith.constant 0 : i32
    %c0_i32_2 = arith.constant 0 : i32
    return %c0_i32, %c0_i32_0, %c0_i32_1 : i32, i32, i32
  }
  func.func @transform_4(%arg0: i32, %arg1: i32) -> (i32, i32) {
    %c0_i32 = arith.constant 0 : i32
    return %arg0, %arg1 : i32, i32
  }
}

</mosaic_0001>

<llo_original>
// kernel: tpu_custom_call.1
$region0: #{tpu_custom_call.1}
  #allocation0 [shape = 'u32[]', space=smem, size = 0x4, offset = 0x4, fixed_abs, tag = 'smem constant byte address 0x4 - core index']
  #allocation1 [shape = 'u32[72,128]{1,0:T(1,128)}', space=vmem, size = 0x9000, scoped, tag = 'internal scratch']
  #allocation2 [shape = 'f32[8,128]{1,0:T(8,128)}', space=vmem, size = 0x1000, scoped, tag = 'scratch operand']
  %s0 = inlined_call_operand.hbm [shape: f32[8,32], index: 0, kind: input, shape index: {}]
  %s1 = inlined_call_operand.hbm [shape: f32[32,128], index: 1, kind: input, shape index: {}]
  %s2 = inlined_call_operand.hbm [shape: f32[1,128,128], index: 2, kind: input, shape index: {}]
  %s3 = inlined_call_operand.vmem [shape: f32[1,1,128], index: 3, kind: input, shape index: {}]
  %s4 = inlined_call_operand.hbm [shape: f32[8,128], index: 4, kind: output, shape index: {}]
  %s5 = sld [smem:[#allocation0]]
  $region42: #{tpu_custom_call.1} parent=0
    _
  %s7 = ssub.s32 1, %s5
  %s8 = scalar_select 0, %s7, %s5
  $region1: #{tpu_custom_call.1} parent=0
    #allocation3 [shape = 'u8[4096]{0}', space=vmem, size = 0x1000, scoped, tag = 'input window, operand 0, single buffered']
    #allocation4 [shape = 's32[1]{0}', space=sflag, size = 0x4, scoped, tag = 'scoped memory for tpu_custom_call.1']
    #allocation5 [shape = 's32[1]{0}', space=sflag, size = 0x4, scoped, tag = 'scoped memory for tpu_custom_call.1']
    #allocation6 [shape = 'u8[16384]{0}', space=vmem, size = 0x4000, scoped, tag = 'input window, operand 1, single buffered']
    #allocation7 [shape = 's32[1]{0}', space=sflag, size = 0x4, scoped, tag = 'scoped memory for tpu_custom_call.1']
    #allocation8 [shape = 'u8[65536]{0}', space=vmem, size = 0x10000, scoped, tag = 'input window, operand 2, single buffered']
    #allocation9 [shape = 'u8[4096]{0}', space=vmem, size = 0x1000, scoped, tag = 'output window, operand 0, single buffered']
    %9 = vsyncpa [#allocation4], 0
    %10 = vsyncpa [#allocation7], 0
    %11 = vsyncpa [#allocation5], 0
    // Predicated region
    $region2: #{tpu_custom_call.1} parent=1 // pred_check
      _
    $region3: #{tpu_custom_call.1} parent=1 // pred_check_branch
      %13 = sbr.rel (0) target = $region5
    $region4: #{tpu_custom_call.1} parent=1 // pred_region
      %15 = vsyncadd [#allocation4], 0
      %s17 = sshll.u32 %s0, 4
      %s18 = int_to_ptr.hbm [resolvable:$true] %s17
      %s19 = sshll.u32 [#allocation3], 4
      %s20 = int_to_ptr.vmem [resolvable:$true] %s19
      %22 = dma.hbm_to_vmem [thread:$0]  %s18, 128, %s20, [#allocation4]
    $region5: #{tpu_custom_call.1} parent=1 // pred_fallthru
      _
    // Predicated region
    $region6: #{tpu_custom_call.1} parent=1 // pred_check
      _
    $region7: #{tpu_custom_call.1} parent=1 // pred_check_branch
      %24 = sbr.rel (0) target = $region9
    $region8: #{tpu_custom_call.1} parent=1 // pred_region
      %26 = vsyncadd [#allocation7], 0
      %s27 = sshll.u32 %s1, 4
      %s28 = int_to_ptr.hbm [resolvable:$true] %s27
      %s29 = sshll.u32 [#allocation6], 4
      %s30 = int_to_ptr.vmem [resolvable:$true] %s29
      %35 = dma.hbm_to_vmem [thread:$0]  %s28, 512, %s30, [#allocation7], 128, 128, 8
    $region9: #{tpu_custom_call.1} parent=1 // pred_fallthru
      _
    // Predicated region
    $region10: #{tpu_custom_call.1} parent=1 // pred_check
      _
    $region11: #{tpu_custom_call.1} parent=1 // pred_check_branch
      %37 = sbr.rel (0) target = $region13
    $region12: #{tpu_custom_call.1} parent=1 // pred_region
      %39 = vsyncadd [#allocation7], 0
      %s40 = sshll.u32 %s2, 4
      %s41 = int_to_ptr.hbm [resolvable:$true] %s40
      %s42 = sshll.u32 [#allocation8], 4
      %s43 = int_to_ptr.vmem [resolvable:$true] %s42
      %48 = dma.hbm_to_vmem [thread:$0]  %s41, 2048, %s43, [#allocation7], 128, 128, 8
    $region13: #{tpu_custom_call.1} parent=1 // pred_fallthru
      _
    // Predicated region
    $region14: #{tpu_custom_call.1} parent=1 // pred_check
      _
    $region15: #{tpu_custom_call.1} parent=1 // pred_check_branch
      %50 = sbr.rel (0) target = $region17
    $region16: #{tpu_custom_call.1} parent=1 // pred_region
      _
    $region17: #{tpu_custom_call.1} parent=1 // pred_fallthru
      _
    // Predicated region
    $region18: #{tpu_custom_call.1} parent=1 // pred_check
      _
    $region19: #{tpu_custom_call.1} parent=1 // pred_check_branch
      %52 = sbr.rel (0) target = $region21
    $region20: #{tpu_custom_call.1} parent=1 // pred_region
      %54 = dma.done [#allocation4], 128
    $region21: #{tpu_custom_call.1} parent=1 // pred_fallthru
      _
    // Predicated region
    $region22: #{tpu_custom_call.1} parent=1 // pred_check
      _
    $region23: #{tpu_custom_call.1} parent=1 // pred_check_branch
      %56 = sbr.rel (0) target = $region25
    $region24: #{tpu_custom_call.1} parent=1 // pred_region
      %58 = dma.done [#allocation7], 512
    $region25: #{tpu_custom_call.1} parent=1 // pred_fallthru
      _
    // Predicated region
    $region26: #{tpu_custom_call.1} parent=1 // pred_check
      _
    $region27: #{tpu_custom_call.1} parent=1 // pred_check_branch
      %60 = sbr.rel (0) target = $region29
    $region28: #{tpu_custom_call.1} parent=1 // pred_region
      %62 = dma.done [#allocation7], 2048
    $region29: #{tpu_custom_call.1} parent=1 // pred_fallthru
      _
    %p63 = scmp.eq.s32.totalorder 0, 0
    // Predicated region
    $region30: #{tpu_custom_call.1} parent=1 // pred_check
      %p64 = pneg %p63
    $region31: #{tpu_custom_call.1} parent=1 // pred_check_branch
      %66 = sbr.rel (%p64) target = $region33
    $region32: #{tpu_custom_call.1} parent=1 // pred_region
      %v67 = vld [vmem:[#allocation3] sm:$0xff]
      %v68 = vld [vmem:[#allocation6] sm:$0xff]
      %v69 = vld [vmem:[#allocation6 + $0x8] sm:$0xff]
      %v70 = vld [vmem:[#allocation6 + $0x10] sm:$0xff]
      %v71 = vld [vmem:[#allocation6 + $0x18] sm:$0xff]
      %vm72 = vcmask 261120
      %v74 = vsel %vm72, %v67, 0
      %76 = vmatpush.msra.mxu0 0.0
      %77 = vmatpush.msra.mxu0 0.0
      %78 = vmatpush.msra.mxu0 0.0
      %79 = vmatpush.msra.mxu0 0.0
      %80 = vmatpush.msra.mxu0 0.0
      %81 = vmatpush.msra.mxu0 0.0
      %82 = vmatpush.msra.mxu0 0.0
      %83 = vmatpush.msra.mxu0 0.0
      %84 = vmatpush.msra.mxu0 0.0
      %85 = vmatpush.msra.mxu0 0.0
      %86 = vmatpush.msra.mxu0 0.0
      %87 = vmatpush.msra.mxu0 0.0
      %88 = vmatpush.msra.mxu0 %v71
      %89 = vmatpush.msra.mxu0 %v70
      %90 = vmatpush.msra.mxu0 %v69
      %91 = vmatpush.msra.mxu0 %v68
      %92 = vmatmul.f32.gmra.mxu0 %v74
      %v93 = vpop.f32.mrf.mxu0
      %v94 = vadd.f32 0.0, %v93
      %95 = vdwg.mxu0
      %96 = vst [vmem:[#allocation2] sm:$0xff] %v94
    $region33: #{tpu_custom_call.1} parent=1 // pred_fallthru
      _
    %v97 = vld [vmem:[#allocation2] sm:$0xff]
    %s98 = smul.u32 0, 128
    %s99 = scalar_lea.vmem [#allocation8], %s98
    %v100 = vld [vmem:[%s99] sm:$0xff]
    %v101 = vld [vmem:[%s99 + $0x8] sm:$0xff]
    %v102 = vld [vmem:[%s99 + $0x10] sm:$0xff]
    %v103 = vld [vmem:[%s99 + $0x18] sm:$0xff]
    %v104 = vld [vmem:[%s99 + $0x20] sm:$0xff]
    %v105 = vld [vmem:[%s99 + $0x28] sm:$0xff]
    %v106 = vld [vmem:[%s99 + $0x30] sm:$0xff]
    %v107 = vld [vmem:[%s99 + $0x38] sm:$0xff]
    %v108 = vld [vmem:[%s99 + $0x40] sm:$0xff]
    %v109 = vld [vmem:[%s99 + $0x48] sm:$0xff]
    %v110 = vld [vmem:[%s99 + $0x50] sm:$0xff]
    %v111 = vld [vmem:[%s99 + $0x58] sm:$0xff]
    %v112 = vld [vmem:[%s99 + $0x60] sm:$0xff]
    %v113 = vld [vmem:[%s99 + $0x68] sm:$0xff]
    %v114 = vld [vmem:[%s99 + $0x70] sm:$0xff]
    %v115 = vld [vmem:[%s99 + $0x78] sm:$0xff]
    %v116 = vld [vmem:[%s3] sm:$0x1]
    %v118 = vperm.slane %v116, 0
    %120 = vmatpush.msra.mxu0 %v115
    %121 = vmatpush.msra.mxu0 %v114
    %122 = vmatpush.msra.mxu0 %v113
    %123 = vmatpush.msra.mxu0 %v112
    %124 = vmatpush.msra.mxu0 %v111
    %125 = vmatpush.msra.mxu0 %v110
    %126 = vmatpush.msra.mxu0 %v109
    %127 = vmatpush.msra.mxu0 %v108
    %128 = vmatpush.msra.mxu0 %v107
    %129 = vmatpush.msra.mxu0 %v106
    %130 = vmatpush.msra.mxu0 %v105
    %131 = vmatpush.msra.mxu0 %v104
    %132 = vmatpush.msra.mxu0 %v103
    %133 = vmatpush.msra.mxu0 %v102
    %134 = vmatpush.msra.mxu0 %v101
    %135 = vmatpush.msra.mxu0 %v100
    %136 = vmatmul.f32.gmra.mxu0 %v97
    %v137 = vpop.f32.mrf.mxu0
    %v138 = vadd.f32 %v118, %v137
    %139 = vdwg.mxu0
    %140 = vst [vmem:[#allocation9] sm:$0xff] %v138
    // Predicated region
    $region34: #{tpu_custom_call.1} parent=1 // pred_check
      _
    $region35: #{tpu_custom_call.1} parent=1 // pred_check_branch
      %142 = sbr.rel (0) target = $region37
    $region36: #{tpu_custom_call.1} parent=1 // pred_region
      %144 = vsyncadd [#allocation5], 0
      %s146 = sshll.u32 [#allocation9], 4
      %s147 = int_to_ptr.vmem [resolvable:$true] %s146
      %s148 = sshll.u32 %s4, 4
      %s149 = int_to_ptr.hbm [resolvable:$true] %s148
      %151 = dma.vmem_to_hbm [thread:$0]  %s147, 128, %s149, [#allocation5]
    $region37: #{tpu_custom_call.1} parent=1 // pred_fallthru
      _
    // Predicated region
    $region38: #{tpu_custom_call.1} parent=1 // pred_check
      _
    $region39: #{tpu_custom_call.1} parent=1 // pred_check_branch
      %153 = sbr.rel (0) target = $region41
    $region40: #{tpu_custom_call.1} parent=1 // pred_region
      %155 = dma.done [#allocation5], 128
    $region41: #{tpu_custom_call.1} parent=1 // pred_fallthru
      _
    %156 = vsyncpa [#allocation4], 1
    %157 = vsyncpa [#allocation7], 1
    %158 = vsyncpa [#allocation5], 1

// kernel: tpu_custom_call.1
$region0: #{tpu_custom_call.1}
  #allocation0 [shape = 'u32[]', space=smem, size = 0x4, offset = 0x4, fixed_abs, tag = 'smem constant byte address 0x4 - core index']
  #allocation1 [shape = 'u32[72,128]{1,0:T(1,128)}', space=vmem, size = 0x9000, scoped, tag = 'internal scratch']
  #allocation2 [shape = 'f32[8,128]{1,0:T(8,128)}', space=vmem, size = 0x1000, scoped, tag = 'scratch operand']
  %s0 = inlined_call_operand.hbm [shape: f32[8,32], index: 0, kind: input, shape index: {}]
  %s1 = inlined_call_operand.hbm [shape: f32[32,128], index: 1, kind: input, shape index: {}]
  %s2 = inlined_call_operand.hbm [shape: f32[1,128,128], index: 2, kind: input, shape index: {}]
  %s3 = inlined_call_operand.vmem [shape: f32[1,1,128], index: 3, kind: input, shape index: {}]
  %s4 = inlined_call_operand.hbm [shape: f32[8,128], index: 4, kind: output, shape index: {}]
  %s5 = sld [smem:[#allocation0]]
  $region42: #{tpu_custom_call.1} parent=0
    _
  %s7 = ssub.s32 1, %s5
  %s8 = scalar_select 0, %s7, %s5
  $region1: #{tpu_custom_call.1} parent=0
    #allocation3 [shape = 'u8[4096]{0}', space=vmem, size = 0x1000, scoped, tag = 'input window, operand 0, single buffered']
    #allocation4 [shape = 's32[1]{0}', space=sflag, size = 0x4, scoped, tag = 'scoped memory for tpu_custom_call.1']
    #allocation5 [shape = 's32[1]{0}', space=sflag, size = 0x4, scoped, tag = 'scoped memory for tpu_custom_call.1']
    #allocation6 [shape = 'u8[16384]{0}', space=vmem, size = 0x4000, scoped, tag = 'input window, operand 1, single buffered']
    #allocation7 [shape = 's32[1]{0}', space=sflag, size = 0x4, scoped, tag = 'scoped memory for tpu_custom_call.1']
    #allocation8 [shape = 'u8[65536]{0}', space=vmem, size = 0x10000, scoped, tag = 'input window, operand 2, single buffered']
    #allocation9 [shape = 'u8[4096]{0}', space=vmem, size = 0x1000, scoped, tag = 'output window, operand 0, single buffered']
    %9 = vsyncpa [#allocation4], 0
    %10 = vsyncpa [#allocation7], 0
    %11 = vsyncpa [#allocation5], 0
    // Predicated region
    $region2: #{tpu_custom_call.1} parent=1 // pred_check
      _
    $region3: #{tpu_custom_call.1} parent=1 // pred_check_branch
      %13 = sbr.rel (0) target = $region5
    $region4: #{tpu_custom_call.1} parent=1 // pred_region
      %15 = vsyncadd [#allocation4], 0
      %s17 = sshll.u32 %s0, 4
      %s18 = int_to_ptr.hbm [resolvable:$true] %s17
      %s19 = sshll.u32 [#allocation3], 4
      %s20 = int_to_ptr.vmem [resolvable:$true] %s19
      %22 = dma.hbm_to_vmem [thread:$0]  %s18, 128, %s20, [#allocation4]
    $region5: #{tpu_custom_call.1} parent=1 // pred_fallthru
      _
    // Predicated region
    $region6: #{tpu_custom_call.1} parent=1 // pred_check
      _
    $region7: #{tpu_custom_call.1} parent=1 // pred_check_branch
      %24 = sbr.rel (0) target = $region9
    $region8: #{tpu_custom_call.1} parent=1 // pred_region
      %26 = vsyncadd [#allocation7], 0
      %s27 = sshll.u32 %s1, 4
      %s28 = int_to_ptr.hbm [resolvable:$true] %s27
      %s29 = sshll.u32 [#allocation6], 4
      %s30 = int_to_ptr.vmem [resolvable:$true] %s29
      %35 = dma.hbm_to_vmem [thread:$0]  %s28, 512, %s30, [#allocation7], 128, 128, 8
    $region9: #{tpu_custom_call.1} parent=1 // pred_fallthru
      _
    // Predicated region
    $region10: #{tpu_custom_call.1} parent=1 // pred_check
      _
    $region11: #{tpu_custom_call.1} parent=1 // pred_check_branch
      %37 = sbr.rel (0) target = $region13
    $region12: #{tpu_custom_call.1} parent=1 // pred_region
      %39 = vsyncadd [#allocation7], 0
      %s40 = sshll.u32 %s2, 4
      %s41 = int_to_ptr.hbm [resolvable:$true] %s40
      %s42 = sshll.u32 [#allocation8], 4
      %s43 = int_to_ptr.vmem [resolvable:$true] %s42
      %48 = dma.hbm_to_vmem [thread:$0]  %s41, 2048, %s43, [#allocation7], 128, 128, 8
    $region13: #{tpu_custom_call.1} parent=1 // pred_fallthru
      _
    // Predicated region
    $region14: #{tpu_custom_call.1} parent=1 // pred_check
      _
    $region15: #{tpu_custom_call.1} parent=1 // pred_check_branch
      %50 = sbr.rel (0) target = $region17
    $region16: #{tpu_custom_call.1} parent=1 // pred_region
      _
    $region17: #{tpu_custom_call.1} parent=1 // pred_fallthru
      _
    // Predicated region
    $region18: #{tpu_custom_call.1} parent=1 // pred_check
      _
    $region19: #{tpu_custom_call.1} parent=1 // pred_check_branch
      %52 = sbr.rel (0) target = $region21
    $region20: #{tpu_custom_call.1} parent=1 // pred_region
      %54 = dma.done [#allocation4], 128
    $region21: #{tpu_custom_call.1} parent=1 // pred_fallthru
      _
    // Predicated region
    $region22: #{tpu_custom_call.1} parent=1 // pred_check
      _
    $region23: #{tpu_custom_call.1} parent=1 // pred_check_branch
      %56 = sbr.rel (0) target = $region25
    $region24: #{tpu_custom_call.1} parent=1 // pred_region
      %58 = dma.done [#allocation7], 512
    $region25: #{tpu_custom_call.1} parent=1 // pred_fallthru
      _
    // Predicated region
    $region26: #{tpu_custom_call.1} parent=1 // pred_check
      _
    $region27: #{tpu_custom_call.1} parent=1 // pred_check_branch
      %60 = sbr.rel (0) target = $region29
    $region28: #{tpu_custom_call.1} parent=1 // pred_region
      %62 = dma.done [#allocation7], 2048
    $region29: #{tpu_custom_call.1} parent=1 // pred_fallthru
      _
    %p63 = scmp.eq.s32.totalorder 0, 0
    // Predicated region
    $region30: #{tpu_custom_call.1} parent=1 // pred_check
      %p64 = pneg %p63
    $region31: #{tpu_custom_call.1} parent=1 // pred_check_branch
      %66 = sbr.rel (%p64) target = $region33
    $region32: #{tpu_custom_call.1} parent=1 // pred_region
      %v67 = vld [vmem:[#allocation3] sm:$0xff]
      %v68 = vld [vmem:[#allocation6] sm:$0xff]
      %v69 = vld [vmem:[#allocation6 + $0x8] sm:$0xff]
      %v70 = vld [vmem:[#allocation6 + $0x10] sm:$0xff]
      %v71 = vld [vmem:[#allocation6 + $0x18] sm:$0xff]
      %vm72 = vcmask 261120
      %v74 = vsel %vm72, %v67, 0
      %76 = vmatpush.msra.mxu0 0.0
      %77 = vmatpush.msra.mxu0 0.0
      %78 = vmatpush.msra.mxu0 0.0
      %79 = vmatpush.msra.mxu0 0.0
      %80 = vmatpush.msra.mxu0 0.0
      %81 = vmatpush.msra.mxu0 0.0
      %82 = vmatpush.msra.mxu0 0.0
      %83 = vmatpush.msra.mxu0 0.0
      %84 = vmatpush.msra.mxu0 0.0
      %85 = vmatpush.msra.mxu0 0.0
      %86 = vmatpush.msra.mxu0 0.0
      %87 = vmatpush.msra.mxu0 0.0
      %88 = vmatpush.msra.mxu0 %v71
      %89 = vmatpush.msra.mxu0 %v70
      %90 = vmatpush.msra.mxu0 %v69
      %91 = vmatpush.msra.mxu0 %v68
      %92 = vmatmul.f32.gmra.mxu0 %v74
      %v93 = vpop.f32.mrf.mxu0
      %v94 = vadd.f32 0.0, %v93
      %95 = vdwg.mxu0
      %96 = vst [vmem:[#allocation2] sm:$0xff] %v94
    $region33: #{tpu_custom_call.1} parent=1 // pred_fallthru
      _
    %v97 = vld [vmem:[#allocation2] sm:$0xff]
    %s98 = smul.u32 0, 128
    %s99 = scalar_lea.vmem [#allocation8], %s98
    %v100 = vld [vmem:[%s99] sm:$0xff]
    %v101 = vld [vmem:[%s99 + $0x8] sm:$0xff]
    %v102 = vld [vmem:[%s99 + $0x10] sm:$0xff]
    %v103 = vld [vmem:[%s99 + $0x18] sm:$0xff]
    %v104 = vld [vmem:[%s99 + $0x20] sm:$0xff]
    %v105 = vld [vmem:[%s99 + $0x28] sm:$0xff]
    %v106 = vld [vmem:[%s99 + $0x30] sm:$0xff]
    %v107 = vld [vmem:[%s99 + $0x38] sm:$0xff]
    %v108 = vld [vmem:[%s99 + $0x40] sm:$0xff]
    %v109 = vld [vmem:[%s99 + $0x48] sm:$0xff]
    %v110 = vld [vmem:[%s99 + $0x50] sm:$0xff]
    %v111 = vld [vmem:[%s99 + $0x58] sm:$0xff]
    %v112 = vld [vmem:[%s99 + $0x60] sm:$0xff]
    %v113 = vld [vmem:[%s99 + $0x68] sm:$0xff]
    %v114 = vld [vmem:[%s99 + $0x70] sm:$0xff]
    %v115 = vld [vmem:[%s99 + $0x78] sm:$0xff]
    %v116 = vld [vmem:[%s3] sm:$0x1]
    %v118 = vperm.slane %v116, 0
    %120 = vmatpush.msra.mxu0 %v115
    %121 = vmatpush.msra.mxu0 %v114
    %122 = vmatpush.msra.mxu0 %v113
    %123 = vmatpush.msra.mxu0 %v112
    %124 = vmatpush.msra.mxu0 %v111
    %125 = vmatpush.msra.mxu0 %v110
    %126 = vmatpush.msra.mxu0 %v109
    %127 = vmatpush.msra.mxu0 %v108
    %128 = vmatpush.msra.mxu0 %v107
    %129 = vmatpush.msra.mxu0 %v106
    %130 = vmatpush.msra.mxu0 %v105
    %131 = vmatpush.msra.mxu0 %v104
    %132 = vmatpush.msra.mxu0 %v103
    %133 = vmatpush.msra.mxu0 %v102
    %134 = vmatpush.msra.mxu0 %v101
    %135 = vmatpush.msra.mxu0 %v100
    %136 = vmatmul.f32.gmra.mxu0 %v97
    %v137 = vpop.f32.mrf.mxu0
    %v138 = vadd.f32 %v118, %v137
    %139 = vdwg.mxu0
    %140 = vst [vmem:[#allocation9] sm:$0xff] %v138
    // Predicated region
    $region34: #{tpu_custom_call.1} parent=1 // pred_check
      _
    $region35: #{tpu_custom_call.1} parent=1 // pred_check_branch
      %142 = sbr.rel (0) target = $region37
    $region36: #{tpu_custom_call.1} parent=1 // pred_region
      %144 = vsyncadd [#allocation5], 0
      %s146 = sshll.u32 [#allocation9], 4
      %s147 = int_to_ptr.vmem [resolvable:$true] %s146
      %s148 = sshll.u32 %s4, 4
      %s149 = int_to_ptr.hbm [resolvable:$true] %s148
      %151 = dma.vmem_to_hbm [thread:$0]  %s147, 128, %s149, [#allocation5]
    $region37: #{tpu_custom_call.1} parent=1 // pred_fallthru
      _
    // Predicated region
    $region38: #{tpu_custom_call.1} parent=1 // pred_check
      _
    $region39: #{tpu_custom_call.1} parent=1 // pred_check_branch
      %153 = sbr.rel (0) target = $region41
    $region40: #{tpu_custom_call.1} parent=1 // pred_region
      %155 = dma.done [#allocation5], 128
    $region41: #{tpu_custom_call.1} parent=1 // pred_fallthru
      _
    %156 = vsyncpa [#allocation4], 1
    %157 = vsyncpa [#allocation7], 1
    %158 = vsyncpa [#allocation5], 1

</llo_original>
